<compile_context>
chip_gen: v7x
topology: tpu7x:2x2x1
jax: 0.10.0
libtpu: 0.0.40
codegen_flags: <defaults>
</compile_context>

<pallas_src>
import functools

import jax
import jax.numpy as jnp
from jax.experimental import pallas as pl
from jax.experimental.pallas import tpu as pltpu


# ---- packed weight slab layout: [64 rows, 16 lanes] f32 --------------------
_ROW_W1X = 0    # rows  0:32 -> W1 rows for x    [32, 16]
_ROW_W1T = 32   # rows 32:34 -> W1 rows for task [2, 16]
_ROW_B1 = 34    # row     34 -> b1               [16]
_ROW_W2 = 40    # rows 40:56 -> W2 (cols 0:4)    [16, 4]
_ROW_B2 = 56    # row     56 -> b2 (cols 0:4)    [4]
_ROW_O = 57     # row     57 -> w_out (col 0), b_out (col 1)
_W_ROWS = 64
_W_COLS = 16


def _corelnet_kernel(x1_ref, x2_ref, task_ref, w_ref,
                     out_ref, y1_ref, y2_ref, z1_ref, z2_ref):
    x1 = x1_ref[...]                                  # [TB, 32]
    x2 = x2_ref[...]                                  # [TB, 32]
    task = task_ref[...]                              # [TB, 2]

    # Static slices of the resident weight slab (free).
    w1x = w_ref[_ROW_W1X:_ROW_W1X + 32, :]            # [32, 16]
    w1t = w_ref[_ROW_W1T:_ROW_W1T + 2, :]             # [2, 16]
    b1 = w_ref[_ROW_B1:_ROW_B1 + 1, :]                # [1, 16]
    w2 = w_ref[_ROW_W2:_ROW_W2 + 16, 0:4]             # [16, 4]
    b2 = w_ref[_ROW_B2:_ROW_B2 + 1, 0:4]              # [1, 4]
    w_out = w_ref[_ROW_O:_ROW_O + 1, 0:1]             # [1, 1]
    b_out = w_ref[_ROW_O:_ROW_O + 1, 1:2]             # [1, 1]

    # hstack([x, task]) @ W1 == x @ W1[:32] + task @ W1[32:34]; the task
    # contribution (+ b1) is identical for both encoder calls -> compute once.
    t_proj = jnp.dot(task, w1t, preferred_element_type=jnp.float32) + b1

    def encode(x):
        z = jnp.maximum(
            jnp.dot(x, w1x, preferred_element_type=jnp.float32) + t_proj, 0.0)
        y = jnp.dot(z, w2, preferred_element_type=jnp.float32) + b2
        return y, z

    y1, z1 = encode(x1)                               # [TB,4], [TB,16]
    y2, z2 = encode(x2)

    # F.normalize(p=2, dim=1): y / max(||y||, 1e-12)   (exact, matches torch)
    eps = jnp.float32(1e-12)
    n1 = jnp.sqrt(jnp.sum(y1 * y1, axis=1, keepdims=True))
    n2 = jnp.sqrt(jnp.sum(y2 * y2, axis=1, keepdims=True))
    y1n = y1 / jnp.maximum(n1, eps)
    y2n = y2 / jnp.maximum(n2, eps)

    # torch.norm of the (already unit-norm) vectors — no eps clamp, so an
    # exactly-zero y vector yields NaN just like the PyTorch forward.
    denom = (jnp.sqrt(jnp.sum(y1n * y1n, axis=1, keepdims=True)) *
             jnp.sqrt(jnp.sum(y2n * y2n, axis=1, keepdims=True)))
    cos = jnp.sum(y1n * y2n, axis=1, keepdims=True) / denom        # [TB, 1]

    logits = cos * w_out + b_out                                   # Linear(1,1)
    out_ref[...] = 1.0 / (1.0 + jnp.exp(-logits))                  # sigmoid
    y1_ref[...] = y1n
    y2_ref[...] = y2n
    z1_ref[...] = z1
    z2_ref[...] = z2


def _round_up(n, m):
    return ((n + m - 1) // m) * m


def _cdiv(a, b):
    return (a + b - 1) // b


def pack_weights(params):
    w = jnp.zeros((_W_ROWS, _W_COLS), jnp.float32)
    w1 = params["w1"].astype(jnp.float32)                      # [34, 16]
    w = w.at[_ROW_W1X:_ROW_W1X + 32, :].set(w1[:32, :])
    w = w.at[_ROW_W1T:_ROW_W1T + 2, :].set(w1[32:34, :])
    w = w.at[_ROW_B1, :].set(params["b1"].astype(jnp.float32))
    w = w.at[_ROW_W2:_ROW_W2 + 16, 0:4].set(params["w2"].astype(jnp.float32))
    w = w.at[_ROW_B2, 0:4].set(params["b2"].astype(jnp.float32))
    w = w.at[_ROW_O, 0].set(params["w_out"].astype(jnp.float32))
    w = w.at[_ROW_O, 1].set(params["b_out"].astype(jnp.float32))
    return w


@functools.partial(jax.jit, static_argnames=("block_b",))
def corelnet_forward(x1, x2, task, params, *, block_b=4096):
    B = x1.shape[0]
    x1 = x1.astype(jnp.float32)                                 # [B, 32]
    x2 = x2.astype(jnp.float32)                                 # [B, 32]
    task = task.astype(jnp.float32)                             # [B, 2]
    w_slab = pack_weights(params)

    # Batch tile: large enough to amortize the ~0.35us/step pipeline overhead,
    # small enough that the double-buffered, lane-padded VMEM footprint
    # (~8 tiles * tb*512 B * 2 buffers) fits under the 48 MiB scoped limit we
    # request below (within physical VMEM on v5e/v6e/v7x). For large batches
    # keep >=2 grid steps so v7x megacore can shard the "parallel" axis.
    block_b = max(8, _round_up(block_b, 8))
    tb = min(block_b, _round_up(B, 8))
    if B >= 64:
        tb = min(tb, _round_up(_cdiv(B, 2), 8))
    grid = (_cdiv(B, tb),)   # ragged last block: OOB reads padded, writes dropped

    flops_per_row = 2 * (2 * 32 * 16 + 2 * 16 * 4) + 2 * 2 * 16 + 80
    bytes_per_row = (32 + 32 + 2 + 1 + 4 + 4 + 16 + 16) * 4
    cost = pl.CostEstimate(
        flops=flops_per_row * B,
        transcendentals=5 * B,
        bytes_accessed=bytes_per_row * B + _W_ROWS * _W_COLS * 4)

    out_shape = (
        jax.ShapeDtypeStruct((B, 1), jnp.float32),    # out
        jax.ShapeDtypeStruct((B, 4), jnp.float32),    # y1 normalized
        jax.ShapeDtypeStruct((B, 4), jnp.float32),    # y2 normalized
        jax.ShapeDtypeStruct((B, 16), jnp.float32),   # z1
        jax.ShapeDtypeStruct((B, 16), jnp.float32),   # z2
    )
    out_specs = (
        pl.BlockSpec((tb, 1), lambda i: (i, 0)),
        pl.BlockSpec((tb, 4), lambda i: (i, 0)),
        pl.BlockSpec((tb, 4), lambda i: (i, 0)),
        pl.BlockSpec((tb, 16), lambda i: (i, 0)),
        pl.BlockSpec((tb, 16), lambda i: (i, 0)),
    )

    return pl.pallas_call(
        _corelnet_kernel,
        out_shape=out_shape,
        grid=grid,
        in_specs=[
            pl.BlockSpec((tb, 32), lambda i: (i, 0)),
            pl.BlockSpec((tb, 32), lambda i: (i, 0)),
            pl.BlockSpec((tb, 2), lambda i: (i, 0)),
            pl.BlockSpec((_W_ROWS, _W_COLS), lambda i: (0, 0)),   # resident weights
        ],
        out_specs=out_specs,
        compiler_params=pltpu.CompilerParams(
            dimension_semantics=("parallel",),
            vmem_limit_bytes=48 * 1024 * 1024),
        cost_estimate=cost,
    )(x1, x2, task, w_slab)


def corelnet_reference(x1, x2, task, params):
    """Pure-JAX reference matching the PyTorch forward."""
    def enc(x):
        xt = jnp.concatenate([x, task], axis=1)
        z = jax.nn.relu(xt @ params["w1"] + params["b1"])
        return z @ params["w2"] + params["b2"], z

    y1, z1 = enc(x1)
    y2, z2 = enc(x2)
    eps = jnp.float32(1e-12)
    y1n = y1 / jnp.maximum(jnp.linalg.norm(y1, axis=1, keepdims=True), eps)
    y2n = y2 / jnp.maximum(jnp.linalg.norm(y2, axis=1, keepdims=True), eps)
    n1 = jnp.linalg.norm(y1n, axis=1, keepdims=True)
    n2 = jnp.linalg.norm(y2n, axis=1, keepdims=True)
    cos = jnp.sum(y1n * y2n, axis=1, keepdims=True) / (n1 * n2)
    out = jax.nn.sigmoid(cos * params["w_out"] + params["b_out"])
    return out, y1n, y2n, z1, z2


def init_params(key):
    # Deterministic synthetic init (shapes from LinearEncoder / CoRelNet.__init__).
    k = jax.random.split(key, 6)
    lim1 = 1.0 / float(jnp.sqrt(34.0))
    lim2 = 1.0 / float(jnp.sqrt(16.0))
    return {
        "w1": jax.random.uniform(k[0], (34, 16), jnp.float32, -lim1, lim1),
        "b1": jax.random.uniform(k[1], (16,), jnp.float32, -lim1, lim1),
        "w2": jax.random.uniform(k[2], (16, 4), jnp.float32, -lim2, lim2),
        "b2": jax.random.uniform(k[3], (4,), jnp.float32, -lim2, lim2),
        "w_out": jax.random.uniform(k[4], (), jnp.float32, -1.0, 1.0),
        "b_out": jax.random.uniform(k[5], (), jnp.float32, -1.0, 1.0),
    }


if __name__ == "__main__":
    key = jax.random.PRNGKey(0)
    kx1, kx2, kt, kp = jax.random.split(key, 4)

    B = 8
    x1 = jax.random.normal(kx1, (B, 32), jnp.float32)
    x2 = jax.random.normal(kx2, (B, 32), jnp.float32)
    task = jax.random.normal(kt, (B, 2), jnp.float32)
    params = init_params(kp)

    outs = jax.block_until_ready(corelnet_forward(x1, x2, task, params))
    refs = jax.block_until_ready(corelnet_reference(x1, x2, task, params))

    out, y1n, y2n, z1, z2 = outs
    assert out.shape == (B, 1) and y1n.shape == (B, 4) and y2n.shape == (B, 4)
    assert z1.shape == (B, 16) and z2.shape == (B, 16)
    for got, want in zip(outs, refs):
        assert bool(jnp.all(jnp.isfinite(got)))
        assert bool(jnp.allclose(got, want, rtol=5e-3, atol=5e-3)), (
            float(jnp.max(jnp.abs(got - want))))

    print("KERNEL_OK")
</pallas_src>

<mosaic_0001>
module attributes {stable_mosaic.version = 11 : i64} {
  func.func @_corelnet_kernel(%arg0: i32, %arg1: memref<8x32xf32, #tpu.memory_space<vmem>>, %arg2: memref<8x32xf32, #tpu.memory_space<vmem>>, %arg3: memref<8x2xf32, #tpu.memory_space<vmem>>, %arg4: memref<64x16xf32, #tpu.memory_space<vmem>>, %arg5: memref<8x1xf32, #tpu.memory_space<vmem>>, %arg6: memref<8x4xf32, #tpu.memory_space<vmem>>, %arg7: memref<8x4xf32, #tpu.memory_space<vmem>>, %arg8: memref<8x16xf32, #tpu.memory_space<vmem>>, %arg9: memref<8x16xf32, #tpu.memory_space<vmem>>) attributes {dimension_semantics = [#tpu.dimension_semantics<parallel>], iteration_bounds = array<i64: 1>, scalar_prefetch = 0 : i64, scratch_operands = 0 : i64, tpu.core_type = #tpu.core_type<tc>, window_params = [{transform_indices = @transform_0, window_bounds = array<i64: 8, 32>}, {transform_indices = @transform_1, window_bounds = array<i64: 8, 32>}, {transform_indices = @transform_2, window_bounds = array<i64: 8, 2>}, {pipeline_mode = #tpu.pipeline_mode<synchronous>, transform_indices = @transform_3, window_bounds = array<i64: 64, 16>}, {transform_indices = @transform_4, window_bounds = array<i64: 8, 1>}, {transform_indices = @transform_5, window_bounds = array<i64: 8, 4>}, {transform_indices = @transform_6, window_bounds = array<i64: 8, 4>}, {transform_indices = @transform_7, window_bounds = array<i64: 8, 16>}, {transform_indices = @transform_8, window_bounds = array<i64: 8, 16>}]} {
    %c0 = arith.constant 0 : index
    %c0_0 = arith.constant 0 : index
    %0 = vector.load %arg1[%c0, %c0_0] : memref<8x32xf32, #tpu.memory_space<vmem>>, vector<8x32xf32>
    %c0_1 = arith.constant 0 : index
    %c0_2 = arith.constant 0 : index
    %1 = vector.load %arg2[%c0_1, %c0_2] : memref<8x32xf32, #tpu.memory_space<vmem>>, vector<8x32xf32>
    %c0_3 = arith.constant 0 : index
    %c0_4 = arith.constant 0 : index
    %2 = vector.load %arg3[%c0_3, %c0_4] : memref<8x2xf32, #tpu.memory_space<vmem>>, vector<8x2xf32>
    %c0_5 = arith.constant 0 : index
    %c0_6 = arith.constant 0 : index
    %3 = vector.load %arg4[%c0_5, %c0_6] : memref<64x16xf32, #tpu.memory_space<vmem>>, vector<32x16xf32>
    %c32 = arith.constant 32 : index
    %c0_7 = arith.constant 0 : index
    %4 = vector.load %arg4[%c32, %c0_7] : memref<64x16xf32, #tpu.memory_space<vmem>>, vector<2x16xf32>
    %c34 = arith.constant 34 : index
    %c0_8 = arith.constant 0 : index
    %5 = vector.load %arg4[%c34, %c0_8] : memref<64x16xf32, #tpu.memory_space<vmem>>, vector<1x16xf32>
    %c40 = arith.constant 40 : index
    %c0_9 = arith.constant 0 : index
    %6 = vector.load %arg4[%c40, %c0_9] : memref<64x16xf32, #tpu.memory_space<vmem>>, vector<16x4xf32>
    %c56 = arith.constant 56 : index
    %c0_10 = arith.constant 0 : index
    %7 = vector.load %arg4[%c56, %c0_10] : memref<64x16xf32, #tpu.memory_space<vmem>>, vector<1x4xf32>
    %c57 = arith.constant 57 : index
    %c0_11 = arith.constant 0 : index
    %8 = vector.load %arg4[%c57, %c0_11] : memref<64x16xf32, #tpu.memory_space<vmem>>, vector<1x1xf32>
    %c57_12 = arith.constant 57 : index
    %c1 = arith.constant 1 : index
    %9 = vector.load %arg4[%c57_12, %c1] : memref<64x16xf32, #tpu.memory_space<vmem>>, vector<1x1xf32>
    %cst = arith.constant dense<0.000000e+00> : vector<8x16xf32>
    %10 = tpu.matmul %2, %4, %cst {dimension_numbers = #tpu.dot_dimension_numbers<[1], [0], [0], [1], [0, 0, 1, 1], [], []>} : vector<8x2xf32>, vector<2x16xf32>, vector<8x16xf32> -> vector<8x16xf32>
    %11 = vector.broadcast %5 : vector<1x16xf32> to vector<8x16xf32>
    %12 = arith.addf %10, %11 : vector<8x16xf32>
    %cst_13 = arith.constant dense<0.000000e+00> : vector<8x16xf32>
    %13 = tpu.matmul %0, %3, %cst_13 {dimension_numbers = #tpu.dot_dimension_numbers<[1], [0], [0], [1], [0, 0, 1, 1], [], []>} : vector<8x32xf32>, vector<32x16xf32>, vector<8x16xf32> -> vector<8x16xf32>
    %14 = arith.addf %13, %12 : vector<8x16xf32>
    %cst_14 = arith.constant 0.000000e+00 : f32
    %15 = vector.broadcast %cst_14 : f32 to vector<8x16xf32>
    %16 = arith.maximumf %14, %15 : vector<8x16xf32>
    %cst_15 = arith.constant dense<0.000000e+00> : vector<8x4xf32>
    %17 = tpu.matmul %16, %6, %cst_15 {dimension_numbers = #tpu.dot_dimension_numbers<[1], [0], [0], [1], [0, 0, 1, 1], [], []>} : vector<8x16xf32>, vector<16x4xf32>, vector<8x4xf32> -> vector<8x4xf32>
    %18 = vector.broadcast %7 : vector<1x4xf32> to vector<8x4xf32>
    %19 = arith.addf %17, %18 : vector<8x4xf32>
    %cst_16 = arith.constant dense<0.000000e+00> : vector<8x16xf32>
    %20 = tpu.matmul %1, %3, %cst_16 {dimension_numbers = #tpu.dot_dimension_numbers<[1], [0], [0], [1], [0, 0, 1, 1], [], []>} : vector<8x32xf32>, vector<32x16xf32>, vector<8x16xf32> -> vector<8x16xf32>
    %21 = arith.addf %20, %12 : vector<8x16xf32>
    %cst_17 = arith.constant 0.000000e+00 : f32
    %22 = vector.broadcast %cst_17 : f32 to vector<8x16xf32>
    %23 = arith.maximumf %21, %22 : vector<8x16xf32>
    %cst_18 = arith.constant dense<0.000000e+00> : vector<8x4xf32>
    %24 = tpu.matmul %23, %6, %cst_18 {dimension_numbers = #tpu.dot_dimension_numbers<[1], [0], [0], [1], [0, 0, 1, 1], [], []>} : vector<8x16xf32>, vector<16x4xf32>, vector<8x4xf32> -> vector<8x4xf32>
    %25 = vector.broadcast %7 : vector<1x4xf32> to vector<8x4xf32>
    %26 = arith.addf %24, %25 : vector<8x4xf32>
    %27 = arith.mulf %19, %19 : vector<8x4xf32>
    %cst_19 = arith.constant dense<0.000000e+00> : vector<8xf32>
    %28 = vector.multi_reduction <add>, %27, %cst_19 [1] : vector<8x4xf32> to vector<8xf32>
    %29 = vector.shape_cast %28 : vector<8xf32> to vector<8x1xf32>
    %30 = math.sqrt %29 : vector<8x1xf32>
    %31 = arith.mulf %26, %26 : vector<8x4xf32>
    %cst_20 = arith.constant dense<0.000000e+00> : vector<8xf32>
    %32 = vector.multi_reduction <add>, %31, %cst_20 [1] : vector<8x4xf32> to vector<8xf32>
    %33 = vector.shape_cast %32 : vector<8xf32> to vector<8x1xf32>
    %34 = math.sqrt %33 : vector<8x1xf32>
    %cst_21 = arith.constant 9.99999996E-13 : f32
    %35 = vector.broadcast %cst_21 : f32 to vector<8x1xf32>
    %36 = arith.maximumf %30, %35 : vector<8x1xf32>
    %37 = vector.broadcast %36 : vector<8x1xf32> to vector<8x4xf32>
    %38 = arith.divf %19, %37 : vector<8x4xf32>
    %cst_22 = arith.constant 9.99999996E-13 : f32
    %39 = vector.broadcast %cst_22 : f32 to vector<8x1xf32>
    %40 = arith.maximumf %34, %39 : vector<8x1xf32>
    %41 = vector.broadcast %40 : vector<8x1xf32> to vector<8x4xf32>
    %42 = arith.divf %26, %41 : vector<8x4xf32>
    %43 = arith.mulf %38, %38 : vector<8x4xf32>
    %cst_23 = arith.constant dense<0.000000e+00> : vector<8xf32>
    %44 = vector.multi_reduction <add>, %43, %cst_23 [1] : vector<8x4xf32> to vector<8xf32>
    %45 = vector.shape_cast %44 : vector<8xf32> to vector<8x1xf32>
    %46 = math.sqrt %45 : vector<8x1xf32>
    %47 = arith.mulf %42, %42 : vector<8x4xf32>
    %cst_24 = arith.constant dense<0.000000e+00> : vector<8xf32>
    %48 = vector.multi_reduction <add>, %47, %cst_24 [1] : vector<8x4xf32> to vector<8xf32>
    %49 = vector.shape_cast %48 : vector<8xf32> to vector<8x1xf32>
    %50 = math.sqrt %49 : vector<8x1xf32>
    %51 = arith.mulf %46, %50 : vector<8x1xf32>
    %52 = arith.mulf %38, %42 : vector<8x4xf32>
    %cst_25 = arith.constant dense<0.000000e+00> : vector<8xf32>
    %53 = vector.multi_reduction <add>, %52, %cst_25 [1] : vector<8x4xf32> to vector<8xf32>
    %54 = vector.shape_cast %53 : vector<8xf32> to vector<8x1xf32>
    %55 = arith.divf %54, %51 : vector<8x1xf32>
    %56 = vector.broadcast %8 : vector<1x1xf32> to vector<8x1xf32>
    %57 = arith.mulf %55, %56 : vector<8x1xf32>
    %58 = vector.broadcast %9 : vector<1x1xf32> to vector<8x1xf32>
    %59 = arith.addf %57, %58 : vector<8x1xf32>
    %cst_26 = arith.constant 0.000000e+00 : f32
    %60 = vector.broadcast %cst_26 : f32 to vector<8x1xf32>
    %61 = arith.subf %60, %59 : vector<8x1xf32>
    %62 = math.exp %61 : vector<8x1xf32>
    %cst_27 = arith.constant 1.000000e+00 : f32
    %63 = vector.broadcast %cst_27 : f32 to vector<8x1xf32>
    %64 = arith.addf %63, %62 : vector<8x1xf32>
    %cst_28 = arith.constant 1.000000e+00 : f32
    %65 = vector.broadcast %cst_28 : f32 to vector<8x1xf32>
    %66 = arith.divf %65, %64 : vector<8x1xf32>
    %c0_29 = arith.constant 0 : index
    %c0_30 = arith.constant 0 : index
    %67 = vector.load %arg5[%c0_29, %c0_30] : memref<8x1xf32, #tpu.memory_space<vmem>>, vector<8x1xf32>
    tpu.vector_store %arg5[%c0_29, %c0_30], %66 {strides = array<i32>} : memref<8x1xf32, #tpu.memory_space<vmem>>, vector<8x1xf32>,
    %c0_31 = arith.constant 0 : index
    %c0_32 = arith.constant 0 : index
    %68 = vector.load %arg6[%c0_31, %c0_32] : memref<8x4xf32, #tpu.memory_space<vmem>>, vector<8x4xf32>
    tpu.vector_store %arg6[%c0_31, %c0_32], %38 {strides = array<i32>} : memref<8x4xf32, #tpu.memory_space<vmem>>, vector<8x4xf32>,
    %c0_33 = arith.constant 0 : index
    %c0_34 = arith.constant 0 : index
    %69 = vector.load %arg7[%c0_33, %c0_34] : memref<8x4xf32, #tpu.memory_space<vmem>>, vector<8x4xf32>
    tpu.vector_store %arg7[%c0_33, %c0_34], %42 {strides = array<i32>} : memref<8x4xf32, #tpu.memory_space<vmem>>, vector<8x4xf32>,
    %c0_35 = arith.constant 0 : index
    %c0_36 = arith.constant 0 : index
    %70 = vector.load %arg8[%c0_35, %c0_36] : memref<8x16xf32, #tpu.memory_space<vmem>>, vector<8x16xf32>
    tpu.vector_store %arg8[%c0_35, %c0_36], %16 {strides = array<i32>} : memref<8x16xf32, #tpu.memory_space<vmem>>, vector<8x16xf32>,
    %c0_37 = arith.constant 0 : index
    %c0_38 = arith.constant 0 : index
    %71 = vector.load %arg9[%c0_37, %c0_38] : memref<8x16xf32, #tpu.memory_space<vmem>>, vector<8x16xf32>
    tpu.vector_store %arg9[%c0_37, %c0_38], %23 {strides = array<i32>} : memref<8x16xf32, #tpu.memory_space<vmem>>, vector<8x16xf32>,
    return
  }
  func.func @transform_0(%arg0: i32) -> (i32, i32) {
    %c0_i32 = arith.constant 0 : i32
    %c0_i32_0 = arith.constant 0 : i32
    return %arg0, %c0_i32 : i32, i32
  }
  func.func @transform_1(%arg0: i32) -> (i32, i32) {
    %c0_i32 = arith.constant 0 : i32
    %c0_i32_0 = arith.constant 0 : i32
    return %arg0, %c0_i32 : i32, i32
  }
  func.func @transform_2(%arg0: i32) -> (i32, i32) {
    %c0_i32 = arith.constant 0 : i32
    %c0_i32_0 = arith.constant 0 : i32
    return %arg0, %c0_i32 : i32, i32
  }
  func.func @transform_3(%arg0: i32) -> (i32, i32) {
    %c0_i32 = arith.constant 0 : i32
    %c0_i32_0 = arith.constant 0 : i32
    %c0_i32_1 = arith.constant 0 : i32
    return %c0_i32, %c0_i32_0 : i32, i32
  }
  func.func @transform_4(%arg0: i32) -> (i32, i32) {
    %c0_i32 = arith.constant 0 : i32
    %c0_i32_0 = arith.constant 0 : i32
    return %arg0, %c0_i32 : i32, i32
  }
  func.func @transform_5(%arg0: i32) -> (i32, i32) {
    %c0_i32 = arith.constant 0 : i32
    %c0_i32_0 = arith.constant 0 : i32
    return %arg0, %c0_i32 : i32, i32
  }
  func.func @transform_6(%arg0: i32) -> (i32, i32) {
    %c0_i32 = arith.constant 0 : i32
    %c0_i32_0 = arith.constant 0 : i32
    return %arg0, %c0_i32 : i32, i32
  }
  func.func @transform_7(%arg0: i32) -> (i32, i32) {
    %c0_i32 = arith.constant 0 : i32
    %c0_i32_0 = arith.constant 0 : i32
    return %arg0, %c0_i32 : i32, i32
  }
  func.func @transform_8(%arg0: i32) -> (i32, i32) {
    %c0_i32 = arith.constant 0 : i32
    %c0_i32_0 = arith.constant 0 : i32
    return %arg0, %c0_i32 : i32, i32
  }
}

</mosaic_0001>

<llo_original>
// kernel: corelnet_forward.1
$region0: #{corelnet_forward.1}
  #allocation0 [shape = 'u32[]', space=smem, size = 0x4, offset = 0x4, fixed_abs, tag = 'smem constant byte address 0x4 - core index']
  #allocation1 [shape = 'u32[144,128]{1,0:T(1,128)}', space=vmem, size = 0x12000, scoped, tag = 'internal scratch']
  %s0 = inlined_call_operand.vmem [shape: f32[8,32], index: 0, kind: input, shape index: {}]
  %s1 = inlined_call_operand.vmem [shape: f32[8,32], index: 1, kind: input, shape index: {}]
  %s2 = inlined_call_operand.vmem [shape: f32[8,2], index: 2, kind: input, shape index: {}]
  %s3 = inlined_call_operand.vmem [shape: f32[64,16], index: 3, kind: input, shape index: {}]
  %s4 = inlined_call_operand.vmem [shape: f32[8,1], index: 4, kind: output, shape index: {0}]
  %s5 = inlined_call_operand.vmem [shape: f32[8,4], index: 5, kind: output, shape index: {1}]
  %s6 = inlined_call_operand.vmem [shape: f32[8,4], index: 6, kind: output, shape index: {2}]
  %s7 = inlined_call_operand.hbm [shape: f32[8,16], index: 7, kind: output, shape index: {3}]
  %s8 = inlined_call_operand.hbm [shape: f32[8,16], index: 8, kind: output, shape index: {4}]
  %9 = xla_tuple %s4, %s5, %s6, %s7, %s8
  %s10 = sld [smem:[#allocation0]]
  $region58: #{corelnet_forward.1} parent=0
    _
  %s12 = ssub.s32 1, %s10
  %s13 = scalar_select 0, %s12, %s10
  $region1: #{corelnet_forward.1} parent=0
    #allocation2 [shape = 'u8[4096]{0}', space=vmem, size = 0x1000, scoped, tag = 'output window, operand 3, single buffered']
    #allocation3 [shape = 's32[1]{0}', space=sflag, size = 0x4, scoped, tag = 'scoped memory for corelnet_forward.1']
    #allocation4 [shape = 'u8[4096]{0}', space=vmem, size = 0x1000, scoped, tag = 'output window, operand 4, single buffered']
    #allocation5 [shape = 's32[1]{0}', space=sflag, size = 0x4, scoped, tag = 'scoped memory for corelnet_forward.1']
    %14 = vsyncpa [#allocation3], 0
    %15 = vsyncpa [#allocation5], 0
    // Predicated region
    $region2: #{corelnet_forward.1} parent=1 // pred_check
      _
    $region3: #{corelnet_forward.1} parent=1 // pred_check_branch
      %17 = sbr.rel (0) target = $region5
    $region4: #{corelnet_forward.1} parent=1 // pred_region
      _
    $region5: #{corelnet_forward.1} parent=1 // pred_fallthru
      _
    // Predicated region
    $region6: #{corelnet_forward.1} parent=1 // pred_check
      _
    $region7: #{corelnet_forward.1} parent=1 // pred_check_branch
      %19 = sbr.rel (0) target = $region9
    $region8: #{corelnet_forward.1} parent=1 // pred_region
      _
    $region9: #{corelnet_forward.1} parent=1 // pred_fallthru
      _
    // Predicated region
    $region10: #{corelnet_forward.1} parent=1 // pred_check
      _
    $region11: #{corelnet_forward.1} parent=1 // pred_check_branch
      %21 = sbr.rel (0) target = $region13
    $region12: #{corelnet_forward.1} parent=1 // pred_region
      _
    $region13: #{corelnet_forward.1} parent=1 // pred_fallthru
      _
    // Predicated region
    $region14: #{corelnet_forward.1} parent=1 // pred_check
      _
    $region15: #{corelnet_forward.1} parent=1 // pred_check_branch
      %23 = sbr.rel (0) target = $region17
    $region16: #{corelnet_forward.1} parent=1 // pred_region
      _
    $region17: #{corelnet_forward.1} parent=1 // pred_fallthru
      _
    %v24 = vld [vmem:[%s0] sm:$0xff]
    %v25 = vld [vmem:[%s1] sm:$0xff]
    %v26 = vld [vmem:[%s2] sm:$0xff]
    %v27 = vld [vmem:[%s3] sm:$0xff]
    %v28 = vld [vmem:[%s3 + $0x8] sm:$0xff]
    %v29 = vld [vmem:[%s3 + $0x10] sm:$0xff]
    %v30 = vld [vmem:[%s3 + $0x18] sm:$0xff]
    %v31 = vld [vmem:[%s3 + $0x20] sm:$0x3]
    %v32 = vld [vmem:[%s3 + $0x22] sm:$0x1]
    %v33 = vld [vmem:[%s3 + $0x28] sm:$0xff]
    %v34 = vld [vmem:[%s3 + $0x30] sm:$0xff]
    %v35 = vld [vmem:[%s3 + $0x38] sm:$0x1]
    %v36 = vld [vmem:[%s3 + $0x39] sm:$0x1]
    %v37 = vlaneseq
    %v38 = vshrl.u32 %v37, 7
    %v39 = vsub.s32 0, %v38
    %v40 = vrot.slane %v32, %v39
    %vm41 = vcmask 15360
    %v43 = vsel %vm41, %v26, 0
    %vm45 = vcmask 1041408
    %v47 = vsel %vm45, %v31, 0
    %49 = vmatprep.subr.mxu0 0.0
    %50 = vmatpush1.msra.mxu0 %v47
    %51 = vmatprep.subr.mxu0 0.0
    %52 = vmatpush1.msra.mxu0 0.0
    %53 = vmatprep.subr.mxu0 0.0
    %54 = vmatpush1.msra.mxu0 0.0
    %55 = vmatprep.subr.mxu0 0.0
    %56 = vmatpush1.msra.mxu0 0.0
    %57 = vmatprep.subr.mxu0 0.0
    %58 = vmatpush1.msra.mxu0 0.0
    %59 = vmatprep.subr.mxu0 0.0
    %60 = vmatpush1.msra.mxu0 0.0
    %61 = vmatprep.subr.mxu0 0.0
    %62 = vmatpush1.msra.mxu0 0.0
    %63 = vmatprep.subr.mxu0 0.0
    %64 = vmatpush1.msra.mxu0 0.0
    %65 = vmatprep.subr.mxu0 0.0
    %66 = vmatpush1.msra.mxu0 0.0
    %67 = vmatprep.subr.mxu0 0.0
    %68 = vmatpush1.msra.mxu0 0.0
    %69 = vmatprep.subr.mxu0 0.0
    %70 = vmatpush1.msra.mxu0 0.0
    %71 = vmatprep.subr.mxu0 0.0
    %72 = vmatpush1.msra.mxu0 0.0
    %73 = vmatprep.subr.mxu0 0.0
    %74 = vmatpush1.msra.mxu0 0.0
    %75 = vmatprep.subr.mxu0 0.0
    %76 = vmatpush1.msra.mxu0 0.0
    %77 = vmatprep.subr.mxu0 0.0
    %78 = vmatpush1.msra.mxu0 0.0
    %79 = vmatprep.subr.mxu0 0.0
    %80 = vmatpush1.msra.mxu0 0.0
    %81 = vmatprep.subr.mxu0 0.0
    %82 = vmatpush1.msra.mxu0 0.0
    %83 = vmatprep.subr.mxu0 0.0
    %84 = vmatpush1.msra.mxu0 0.0
    %85 = vmatprep.subr.mxu0 0.0
    %86 = vmatpush1.msra.mxu0 0.0
    %87 = vmatprep.subr.mxu0 0.0
    %88 = vmatpush1.msra.mxu0 0.0
    %89 = vmatprep.subr.mxu0 0.0
    %90 = vmatpush1.msra.mxu0 0.0
    %91 = vmatprep.subr.mxu0 0.0
    %92 = vmatpush1.msra.mxu0 0.0
    %93 = vmatprep.subr.mxu0 0.0
    %94 = vmatpush1.msra.mxu0 0.0
    %95 = vmatprep.subr.mxu0 0.0
    %96 = vmatpush1.msra.mxu0 0.0
    %97 = vmatprep.subr.mxu0 0.0
    %98 = vmatpush1.msra.mxu0 0.0
    %99 = vmatprep.subr.mxu0 0.0
    %100 = vmatpush1.msra.mxu0 0.0
    %101 = vmatprep.subr.mxu0 0.0
    %102 = vmatpush1.msra.mxu0 0.0
    %103 = vmatprep.subr.mxu0 0.0
    %104 = vmatpush1.msra.mxu0 0.0
    %105 = vmatprep.subr.mxu0 0.0
    %106 = vmatpush1.msra.mxu0 0.0
    %107 = vmatprep.subr.mxu0 0.0
    %108 = vmatpush1.msra.mxu0 0.0
    %109 = vmatprep.subr.mxu0 0.0
    %110 = vmatpush1.msra.mxu0 0.0
    %111 = vmatprep.subr.mxu0 0.0
    %112 = vmatpush1.msra.mxu0 0.0
    %113 = vmatprep.mubr.f32.mxu0 0.0
    %114 = vmatmul.mubr.f32.gmra.mrb[0].mxu0 %v43
    %v115 = vpop.f32.mrb[0].mxu0
    %v116 = vadd.f32 %v40, %v115
    %v117 = vpop.f32.mrb[0].mxu0
    %118 = vdwg.mxu0
    %vm119 = vcmask 261120
    %v121 = vsel %vm119, %v24, 0
    %123 = vmatprep.subr.mxu0 0.0
    %124 = vmatpush1.msra.mxu0 %v27
    %125 = vmatprep.subr.mxu0 0.0
    %126 = vmatpush1.msra.mxu0 %v28
    %127 = vmatprep.subr.mxu0 0.0
    %128 = vmatpush1.msra.mxu0 %v29
    %129 = vmatprep.subr.mxu0 0.0
    %130 = vmatpush1.msra.mxu0 %v30
    %131 = vmatprep.subr.mxu0 0.0
    %132 = vmatpush1.msra.mxu0 0.0
    %133 = vmatprep.subr.mxu0 0.0
    %134 = vmatpush1.msra.mxu0 0.0
    %135 = vmatprep.subr.mxu0 0.0
    %136 = vmatpush1.msra.mxu0 0.0
    %137 = vmatprep.subr.mxu0 0.0
    %138 = vmatpush1.msra.mxu0 0.0
    %139 = vmatprep.subr.mxu0 0.0
    %140 = vmatpush1.msra.mxu0 0.0
    %141 = vmatprep.subr.mxu0 0.0
    %142 = vmatpush1.msra.mxu0 0.0
    %143 = vmatprep.subr.mxu0 0.0
    %144 = vmatpush1.msra.mxu0 0.0
    %145 = vmatprep.subr.mxu0 0.0
    %146 = vmatpush1.msra.mxu0 0.0
    %147 = vmatprep.subr.mxu0 0.0
    %148 = vmatpush1.msra.mxu0 0.0
    %149 = vmatprep.subr.mxu0 0.0
    %150 = vmatpush1.msra.mxu0 0.0
    %151 = vmatprep.subr.mxu0 0.0
    %152 = vmatpush1.msra.mxu0 0.0
    %153 = vmatprep.subr.mxu0 0.0
    %154 = vmatpush1.msra.mxu0 0.0
    %155 = vmatprep.subr.mxu0 0.0
    %156 = vmatpush1.msra.mxu0 0.0
    %157 = vmatprep.subr.mxu0 0.0
    %158 = vmatpush1.msra.mxu0 0.0
    %159 = vmatprep.subr.mxu0 0.0
    %160 = vmatpush1.msra.mxu0 0.0
    %161 = vmatprep.subr.mxu0 0.0
    %162 = vmatpush1.msra.mxu0 0.0
    %163 = vmatprep.subr.mxu0 0.0
    %164 = vmatpush1.msra.mxu0 0.0
    %165 = vmatprep.subr.mxu0 0.0
    %166 = vmatpush1.msra.mxu0 0.0
    %167 = vmatprep.subr.mxu0 0.0
    %168 = vmatpush1.msra.mxu0 0.0
    %169 = vmatprep.subr.mxu0 0.0
    %170 = vmatpush1.msra.mxu0 0.0
    %171 = vmatprep.subr.mxu0 0.0
    %172 = vmatpush1.msra.mxu0 0.0
    %173 = vmatprep.subr.mxu0 0.0
    %174 = vmatpush1.msra.mxu0 0.0
    %175 = vmatprep.subr.mxu0 0.0
    %176 = vmatpush1.msra.mxu0 0.0
    %177 = vmatprep.subr.mxu0 0.0
    %178 = vmatpush1.msra.mxu0 0.0
    %179 = vmatprep.subr.mxu0 0.0
    %180 = vmatpush1.msra.mxu0 0.0
    %181 = vmatprep.subr.mxu0 0.0
    %182 = vmatpush1.msra.mxu0 0.0
    %183 = vmatprep.subr.mxu0 0.0
    %184 = vmatpush1.msra.mxu0 0.0
    %185 = vmatprep.subr.mxu0 0.0
    %186 = vmatpush1.msra.mxu0 0.0
    %187 = vmatprep.mubr.f32.mxu0 0.0
    %188 = vmatmul.mubr.f32.gmra.mrb[0].mxu0 %v121
    %v189 = vpop.f32.mrb[0].mxu0
    %v190 = vadd.f32 %v116, %v189
    %v191 = vpop.f32.mrb[0].mxu0
    %192 = vdwg.mxu0
    %v193 = vmax.f32 %v190, 0.0
    %v194 = vlaneseq
    %v195 = vshrl.u32 %v194, 7
    %v196 = vsub.s32 0, %v195
    %v197 = vrot.slane %v35, %v196
    %vm198 = vcmask 130048
    %v200 = vsel %vm198, %v193, 0
    %202 = vmatprep.subr.mxu0 0.0
    %203 = vmatpush1.msra.mxu0 %v33
    %204 = vmatprep.subr.mxu0 0.0
    %205 = vmatpush1.msra.mxu0 %v34
    %206 = vmatprep.subr.mxu0 0.0
    %207 = vmatpush1.msra.mxu0 0.0
    %208 = vmatprep.subr.mxu0 0.0
    %209 = vmatpush1.msra.mxu0 0.0
    %210 = vmatprep.subr.mxu0 0.0
    %211 = vmatpush1.msra.mxu0 0.0
    %212 = vmatprep.subr.mxu0 0.0
    %213 = vmatpush1.msra.mxu0 0.0
    %214 = vmatprep.subr.mxu0 0.0
    %215 = vmatpush1.msra.mxu0 0.0
    %216 = vmatprep.subr.mxu0 0.0
    %217 = vmatpush1.msra.mxu0 0.0
    %218 = vmatprep.subr.mxu0 0.0
    %219 = vmatpush1.msra.mxu0 0.0
    %220 = vmatprep.subr.mxu0 0.0
    %221 = vmatpush1.msra.mxu0 0.0
    %222 = vmatprep.subr.mxu0 0.0
    %223 = vmatpush1.msra.mxu0 0.0
    %224 = vmatprep.subr.mxu0 0.0
    %225 = vmatpush1.msra.mxu0 0.0
    %226 = vmatprep.subr.mxu0 0.0
    %227 = vmatpush1.msra.mxu0 0.0
    %228 = vmatprep.subr.mxu0 0.0
    %229 = vmatpush1.msra.mxu0 0.0
    %230 = vmatprep.subr.mxu0 0.0
    %231 = vmatpush1.msra.mxu0 0.0
    %232 = vmatprep.subr.mxu0 0.0
    %233 = vmatpush1.msra.mxu0 0.0
    %234 = vmatprep.subr.mxu0 0.0
    %235 = vmatpush1.msra.mxu0 0.0
    %236 = vmatprep.subr.mxu0 0.0
    %237 = vmatpush1.msra.mxu0 0.0
    %238 = vmatprep.subr.mxu0 0.0
    %239 = vmatpush1.msra.mxu0 0.0
    %240 = vmatprep.subr.mxu0 0.0
    %241 = vmatpush1.msra.mxu0 0.0
    %242 = vmatprep.subr.mxu0 0.0
    %243 = vmatpush1.msra.mxu0 0.0
    %244 = vmatprep.subr.mxu0 0.0
    %245 = vmatpush1.msra.mxu0 0.0
    %246 = vmatprep.subr.mxu0 0.0
    %247 = vmatpush1.msra.mxu0 0.0
    %248 = vmatprep.subr.mxu0 0.0
    %249 = vmatpush1.msra.mxu0 0.0
    %250 = vmatprep.subr.mxu0 0.0
    %251 = vmatpush1.msra.mxu0 0.0
    %252 = vmatprep.subr.mxu0 0.0
    %253 = vmatpush1.msra.mxu0 0.0
    %254 = vmatprep.subr.mxu0 0.0
    %255 = vmatpush1.msra.mxu0 0.0
    %256 = vmatprep.subr.mxu0 0.0
    %257 = vmatpush1.msra.mxu0 0.0
    %258 = vmatprep.subr.mxu0 0.0
    %259 = vmatpush1.msra.mxu0 0.0
    %260 = vmatprep.subr.mxu0 0.0
    %261 = vmatpush1.msra.mxu0 0.0
    %262 = vmatprep.subr.mxu0 0.0
    %263 = vmatpush1.msra.mxu0 0.0
    %264 = vmatprep.subr.mxu0 0.0
    %265 = vmatpush1.msra.mxu0 0.0
    %266 = vmatprep.mubr.f32.mxu0 0.0
    %267 = vmatmul.mubr.f32.gmra.mrb[0].mxu0 %v200
    %v268 = vpop.f32.mrb[0].mxu0
    %v269 = vadd.f32 %v197, %v268
    %v270 = vpop.f32.mrb[0].mxu0
    %271 = vdwg.mxu0
    %v273 = vsel %vm119, %v25, 0
    %275 = vmatprep.subr.mxu0 0.0
    %276 = vmatpush1.msra.mxu0 %v27
    %277 = vmatprep.subr.mxu0 0.0
    %278 = vmatpush1.msra.mxu0 %v28
    %279 = vmatprep.subr.mxu0 0.0
    %280 = vmatpush1.msra.mxu0 %v29
    %281 = vmatprep.subr.mxu0 0.0
    %282 = vmatpush1.msra.mxu0 %v30
    %283 = vmatprep.subr.mxu0 0.0
    %284 = vmatpush1.msra.mxu0 0.0
    %285 = vmatprep.subr.mxu0 0.0
    %286 = vmatpush1.msra.mxu0 0.0
    %287 = vmatprep.subr.mxu0 0.0
    %288 = vmatpush1.msra.mxu0 0.0
    %289 = vmatprep.subr.mxu0 0.0
    %290 = vmatpush1.msra.mxu0 0.0
    %291 = vmatprep.subr.mxu0 0.0
    %292 = vmatpush1.msra.mxu0 0.0
    %293 = vmatprep.subr.mxu0 0.0
    %294 = vmatpush1.msra.mxu0 0.0
    %295 = vmatprep.subr.mxu0 0.0
    %296 = vmatpush1.msra.mxu0 0.0
    %297 = vmatprep.subr.mxu0 0.0
    %298 = vmatpush1.msra.mxu0 0.0
    %299 = vmatprep.subr.mxu0 0.0
    %300 = vmatpush1.msra.mxu0 0.0
    %301 = vmatprep.subr.mxu0 0.0
    %302 = vmatpush1.msra.mxu0 0.0
    %303 = vmatprep.subr.mxu0 0.0
    %304 = vmatpush1.msra.mxu0 0.0
    %305 = vmatprep.subr.mxu0 0.0
    %306 = vmatpush1.msra.mxu0 0.0
    %307 = vmatprep.subr.mxu0 0.0
    %308 = vmatpush1.msra.mxu0 0.0
    %309 = vmatprep.subr.mxu0 0.0
    %310 = vmatpush1.msra.mxu0 0.0
    %311 = vmatprep.subr.mxu0 0.0
    %312 = vmatpush1.msra.mxu0 0.0
    %313 = vmatprep.subr.mxu0 0.0
    %314 = vmatpush1.msra.mxu0 0.0
    %315 = vmatprep.subr.mxu0 0.0
    %316 = vmatpush1.msra.mxu0 0.0
    %317 = vmatprep.subr.mxu0 0.0
    %318 = vmatpush1.msra.mxu0 0.0
    %319 = vmatprep.subr.mxu0 0.0
    %320 = vmatpush1.msra.mxu0 0.0
    %321 = vmatprep.subr.mxu0 0.0
    %322 = vmatpush1.msra.mxu0 0.0
    %323 = vmatprep.subr.mxu0 0.0
    %324 = vmatpush1.msra.mxu0 0.0
    %325 = vmatprep.subr.mxu0 0.0
    %326 = vmatpush1.msra.mxu0 0.0
    %327 = vmatprep.subr.mxu0 0.0
    %328 = vmatpush1.msra.mxu0 0.0
    %329 = vmatprep.subr.mxu0 0.0
    %330 = vmatpush1.msra.mxu0 0.0
    %331 = vmatprep.subr.mxu0 0.0
    %332 = vmatpush1.msra.mxu0 0.0
    %333 = vmatprep.subr.mxu0 0.0
    %334 = vmatpush1.msra.mxu0 0.0
    %335 = vmatprep.subr.mxu0 0.0
    %336 = vmatpush1.msra.mxu0 0.0
    %337 = vmatprep.subr.mxu0 0.0
    %338 = vmatpush1.msra.mxu0 0.0
    %339 = vmatprep.mubr.f32.mxu0 0.0
    %340 = vmatmul.mubr.f32.gmra.mrb[0].mxu0 %v273
    %v341 = vpop.f32.mrb[0].mxu0
    %v342 = vadd.f32 %v116, %v341
    %v343 = vpop.f32.mrb[0].mxu0
    %344 = vdwg.mxu0
    %v345 = vmax.f32 %v342, 0.0
    %v347 = vsel %vm198, %v345, 0
    %349 = vmatprep.subr.mxu0 0.0
    %350 = vmatpush1.msra.mxu0 %v33
    %351 = vmatprep.subr.mxu0 0.0
    %352 = vmatpush1.msra.mxu0 %v34
    %353 = vmatprep.subr.mxu0 0.0
    %354 = vmatpush1.msra.mxu0 0.0
    %355 = vmatprep.subr.mxu0 0.0
    %356 = vmatpush1.msra.mxu0 0.0
    %357 = vmatprep.subr.mxu0 0.0
    %358 = vmatpush1.msra.mxu0 0.0
    %359 = vmatprep.subr.mxu0 0.0
    %360 = vmatpush1.msra.mxu0 0.0
    %361 = vmatprep.subr.mxu0 0.0
    %362 = vmatpush1.msra.mxu0 0.0
    %363 = vmatprep.subr.mxu0 0.0
    %364 = vmatpush1.msra.mxu0 0.0
    %365 = vmatprep.subr.mxu0 0.0
    %366 = vmatpush1.msra.mxu0 0.0
    %367 = vmatprep.subr.mxu0 0.0
    %368 = vmatpush1.msra.mxu0 0.0
    %369 = vmatprep.subr.mxu0 0.0
    %370 = vmatpush1.msra.mxu0 0.0
    %371 = vmatprep.subr.mxu0 0.0
    %372 = vmatpush1.msra.mxu0 0.0
    %373 = vmatprep.subr.mxu0 0.0
    %374 = vmatpush1.msra.mxu0 0.0
    %375 = vmatprep.subr.mxu0 0.0
    %376 = vmatpush1.msra.mxu0 0.0
    %377 = vmatprep.subr.mxu0 0.0
    %378 = vmatpush1.msra.mxu0 0.0
    %379 = vmatprep.subr.mxu0 0.0
    %380 = vmatpush1.msra.mxu0 0.0
    %381 = vmatprep.subr.mxu0 0.0
    %382 = vmatpush1.msra.mxu0 0.0
    %383 = vmatprep.subr.mxu0 0.0
    %384 = vmatpush1.msra.mxu0 0.0
    %385 = vmatprep.subr.mxu0 0.0
    %386 = vmatpush1.msra.mxu0 0.0
    %387 = vmatprep.subr.mxu0 0.0
    %388 = vmatpush1.msra.mxu0 0.0
    %389 = vmatprep.subr.mxu0 0.0
    %390 = vmatpush1.msra.mxu0 0.0
    %391 = vmatprep.subr.mxu0 0.0
    %392 = vmatpush1.msra.mxu0 0.0
    %393 = vmatprep.subr.mxu0 0.0
    %394 = vmatpush1.msra.mxu0 0.0
    %395 = vmatprep.subr.mxu0 0.0
    %396 = vmatpush1.msra.mxu0 0.0
    %397 = vmatprep.subr.mxu0 0.0
    %398 = vmatpush1.msra.mxu0 0.0
    %399 = vmatprep.subr.mxu0 0.0
    %400 = vmatpush1.msra.mxu0 0.0
    %401 = vmatprep.subr.mxu0 0.0
    %402 = vmatpush1.msra.mxu0 0.0
    %403 = vmatprep.subr.mxu0 0.0
    %404 = vmatpush1.msra.mxu0 0.0
    %405 = vmatprep.subr.mxu0 0.0
    %406 = vmatpush1.msra.mxu0 0.0
    %407 = vmatprep.subr.mxu0 0.0
    %408 = vmatpush1.msra.mxu0 0.0
    %409 = vmatprep.subr.mxu0 0.0
    %410 = vmatpush1.msra.mxu0 0.0
    %411 = vmatprep.subr.mxu0 0.0
    %412 = vmatpush1.msra.mxu0 0.0
    %413 = vmatprep.mubr.f32.mxu0 0.0
    %414 = vmatmul.mubr.f32.gmra.mrb[0].mxu0 %v347
    %v415 = vpop.f32.mrb[0].mxu0
    %v416 = vadd.f32 %v197, %v415
    %v417 = vpop.f32.mrb[0].mxu0
    %418 = vdwg.mxu0
    %v419 = vmul.f32 %v269, %v269
    %vm420 = vcmask 31744
    %v421 = vsel %vm420, %v419, 0.0
    %422 = vadd.xlane.f32.xlu0 %v421
    %v423 = vpop.xlane.xlu0 %422
    %v424 = vrsqrt.pop %v423
    %v425 = vmul.f32 %v423, %v424
    %vm426 = vcmp.eq.f32.partialorder %v423, inf
    %v427 = vsel %vm426, %v423, %v425
    %vm428 = vcmp.eq.f32.partialorder %v423, 0.0
    %v429 = vand.u32 %v423, 2147483648
    %v430 = vsel %vm428, %v429, %v427
    %v431 = vmul.f32 %v416, %v416
    %v432 = vsel %vm420, %v431, 0.0
    %433 = vadd.xlane.f32.xlu0 %v432
    %v434 = vpop.xlane.xlu0 %433
    %v435 = vrsqrt.pop %v434
    %v436 = vmul.f32 %v434, %v435
    %vm437 = vcmp.eq.f32.partialorder %v434, inf
    %v438 = vsel %vm437, %v434, %v436
    %vm439 = vcmp.eq.f32.partialorder %v434, 0.0
    %v440 = vand.u32 %v434, 2147483648
    %v441 = vsel %vm439, %v440, %v438
    %v442 = vmax.f32 %v430, 1e-12
    %v443 = vrcp.pop %v442
    %v444 = vmul.f32 %v269, %v443
    %v445 = vmax.f32 %v441, 1e-12
    %v446 = vrcp.pop %v445
    %v447 = vmul.f32 %v416, %v446
    %v448 = vmul.f32 %v444, %v444
    %v449 = vsel %vm420, %v448, 0.0
    %450 = vadd.xlane.f32.xlu0 %v449
    %v451 = vpop.xlane.xlu0 %450
    %v452 = vrsqrt.pop %v451
    %v453 = vmul.f32 %v451, %v452
    %vm454 = vcmp.eq.f32.partialorder %v451, inf
    %v455 = vsel %vm454, %v451, %v453
    %vm456 = vcmp.eq.f32.partialorder %v451, 0.0
    %v457 = vand.u32 %v451, 2147483648
    %v458 = vsel %vm456, %v457, %v455
    %v459 = vmul.f32 %v447, %v447
    %v460 = vsel %vm420, %v459, 0.0
    %461 = vadd.xlane.f32.xlu0 %v460
    %v462 = vpop.xlane.xlu0 %461
    %v463 = vrsqrt.pop %v462
    %v464 = vmul.f32 %v462, %v463
    %vm465 = vcmp.eq.f32.partialorder %v462, inf
    %v466 = vsel %vm465, %v462, %v464
    %vm467 = vcmp.eq.f32.partialorder %v462, 0.0
    %v468 = vand.u32 %v462, 2147483648
    %v469 = vsel %vm467, %v468, %v466
    %v470 = vmul.f32 %v458, %v469
    %v471 = vmul.f32 %v444, %v447
    %v472 = vsel %vm420, %v471, 0.0
    %473 = vadd.xlane.f32.xlu0 %v472
    %v474 = vpop.xlane.xlu0 %473
    %v475 = vrcp.pop %v470
    %v476 = vmul.f32 %v474, %v475
    %v477 = vlaneseq
    %v478 = vshrl.u32 %v477, 7
    %v479 = vsub.s32 0, %v478
    %v480 = vrot.slane %v36, %v479
    %v481 = vmul.f32 %v476, %v480
    %483 = vrot.lane.b32.xlu0 %v480, 127
    %v484 = vpop.permute.xlu0 %483
    %v486 = vadd.f32 %v481, %v484
    %v487 = vsub.f32 0.0, %v486
    %v488 = vmul.f32 %v487, 1.442695
    %v489 = vpow.pop %v488
    %v490 = vadd.f32 %v489, 1.0
    %v491 = vrcp.pop %v490
    %v492 = vmul.f32 1.0, %v491
    %vm493 = vcmask 7168
    %494 = vst.msk [vmem:[%s4] sm:$0xff] %vm493, %v492
    %495 = vst.msk [vmem:[%s5] sm:$0xff] %vm420, %v444
    %496 = vst.msk [vmem:[%s6] sm:$0xff] %vm420, %v447
    %497 = vst.msk [vmem:[#allocation2] sm:$0xff] %vm198, %v193
    %498 = vst.msk [vmem:[#allocation4] sm:$0xff] %vm198, %v345
    // Predicated region
    $region18: #{corelnet_forward.1} parent=1 // pred_check
      _
    $region19: #{corelnet_forward.1} parent=1 // pred_check_branch
      %500 = sbr.rel (0) target = $region21
    $region20: #{corelnet_forward.1} parent=1 // pred_region
      _
    $region21: #{corelnet_forward.1} parent=1 // pred_fallthru
      _
    // Predicated region
    $region22: #{corelnet_forward.1} parent=1 // pred_check
      _
    $region23: #{corelnet_forward.1} parent=1 // pred_check_branch
      %502 = sbr.rel (0) target = $region25
    $region24: #{corelnet_forward.1} parent=1 // pred_region
      _
    $region25: #{corelnet_forward.1} parent=1 // pred_fallthru
      _
    // Predicated region
    $region26: #{corelnet_forward.1} parent=1 // pred_check
      _
    $region27: #{corelnet_forward.1} parent=1 // pred_check_branch
      %504 = sbr.rel (0) target = $region29
    $region28: #{corelnet_forward.1} parent=1 // pred_region
      _
    $region29: #{corelnet_forward.1} parent=1 // pred_fallthru
      _
    // Predicated region
    $region30: #{corelnet_forward.1} parent=1 // pred_check
      _
    $region31: #{corelnet_forward.1} parent=1 // pred_check_branch
      %506 = sbr.rel (0) target = $region33
    $region32: #{corelnet_forward.1} parent=1 // pred_region
      %s508 = ssub.s32 128, 128
      %509 = vsyncadd [#allocation3], %s508
      %s511 = sshll.u32 [#allocation2], 4
      %s512 = int_to_ptr.vmem [resolvable:$true] %s511
      %514 = dma.vmem_to_hbm [thread:$0]  %s512, 128, %s7, [#allocation3]
    $region33: #{corelnet_forward.1} parent=1 // pred_fallthru
      _
    // Predicated region
    $region34: #{corelnet_forward.1} parent=1 // pred_check
      _
    $region35: #{corelnet_forward.1} parent=1 // pred_check_branch
      %516 = sbr.rel (0) target = $region37
    $region36: #{corelnet_forward.1} parent=1 // pred_region
      %s518 = ssub.s32 128, 128
      %519 = vsyncadd [#allocation5], %s518
      %s521 = sshll.u32 [#allocation4], 4
      %s522 = int_to_ptr.vmem [resolvable:$true] %s521
      %524 = dma.vmem_to_hbm [thread:$0]  %s522, 128, %s8, [#allocation5]
    $region37: #{corelnet_forward.1} parent=1 // pred_fallthru
      _
    // Predicated region
    $region38: #{corelnet_forward.1} parent=1 // pred_check
      _
    $region39: #{corelnet_forward.1} parent=1 // pred_check_branch
      %526 = sbr.rel (0) target = $region41
    $region40: #{corelnet_forward.1} parent=1 // pred_region
      _
    $region41: #{corelnet_forward.1} parent=1 // pred_fallthru
      _
    // Predicated region
    $region42: #{corelnet_forward.1} parent=1 // pred_check
      _
    $region43: #{corelnet_forward.1} parent=1 // pred_check_branch
      %528 = sbr.rel (0) target = $region45
    $region44: #{corelnet_forward.1} parent=1 // pred_region
      _
    $region45: #{corelnet_forward.1} parent=1 // pred_fallthru
      _
    // Predicated region
    $region46: #{corelnet_forward.1} parent=1 // pred_check
      _
    $region47: #{corelnet_forward.1} parent=1 // pred_check_branch
      %530 = sbr.rel (0) target = $region49
    $region48: #{corelnet_forward.1} parent=1 // pred_region
      _
    $region49: #{corelnet_forward.1} parent=1 // pred_fallthru
      _
    // Predicated region
    $region50: #{corelnet_forward.1} parent=1 // pred_check
      _
    $region51: #{corelnet_forward.1} parent=1 // pred_check_branch
      %532 = sbr.rel (0) target = $region53
    $region52: #{corelnet_forward.1} parent=1 // pred_region
      %533 = dma.done [#allocation3], 128
    $region53: #{corelnet_forward.1} parent=1 // pred_fallthru
      _
    // Predicated region
    $region54: #{corelnet_forward.1} parent=1 // pred_check
      _
    $region55: #{corelnet_forward.1} parent=1 // pred_check_branch
      %535 = sbr.rel (0) target = $region57
    $region56: #{corelnet_forward.1} parent=1 // pred_region
      %536 = dma.done [#allocation5], 128
    $region57: #{corelnet_forward.1} parent=1 // pred_fallthru
      _
    %537 = vsyncpa [#allocation3], 1
    %538 = vsyncpa [#allocation5], 1

</llo_original>
